<compile_context>
chip_gen: v5e
topology: v5e:2x2
jax: 0.10.0
libtpu: 0.0.40
codegen_flags: <defaults>
</compile_context>

<pallas_src>
import jax
import jax.numpy as jnp
from jax.experimental import pallas as pl
from jax.experimental.pallas import tpu as pltpu


def _log_softmax_kernel(x_ref, logits_ref):
    # One (TILE_B, N) tile: batch rows on sublanes, classes on lanes.
    x = x_ref[...].astype(jnp.float32)

    # Numerically stable log-softmax over the lane axis (torch dim=-1).
    x_max = jnp.max(x, axis=-1, keepdims=True)
    shifted = x - x_max
    denom = jnp.sum(jnp.exp(shifted), axis=-1, keepdims=True)

    # x - logsumexp(x, dim=-1, keepdim=True)
    logits_ref[...] = (shifted - jnp.log(denom)).astype(logits_ref.dtype)


def _round_up(v, m):
    return (v + m - 1) // m * m


def _vmem_limit_bytes():
    # Per-generation VMEM budget (64 MiB/TC on v7x, 128 MiB on v5e/v6e).
    try:
        cap = pltpu.get_tpu_info().vmem_capacity_bytes
    except Exception:
        cap = 64 * 1024 * 1024  # strictest case (v7x per-TC) as fallback
    # Leave headroom for compiler-internal scratch; never request > physical.
    return int(min(int(cap * 0.85), 112 * 1024 * 1024))


def _choose_tile_b(b, n, io_bytes, vmem_limit):
    # Per-row VMEM footprint: lanes pad to a multiple of 128 in VMEM;
    # pipeline = (1 in + 1 out) streams x 2 buffers in the I/O dtype, plus
    # ~5 live full-tile f32 temporaries in the kernel body.
    n_lanes = _round_up(n, 128)
    budget = int(vmem_limit * 0.65)
    per_row = n_lanes * (2 * 2 * io_bytes + 5 * 4)
    tile = budget // per_row
    b_ceil = _round_up(max(b, 1), 8)          # sublane-aligned cover of batch
    tile = int(max(8, min(tile, b_ceil, 32768)))
    return max(8, (tile // 8) * 8)


def categorical_forward(x):
    """Returns normalized logits (x - logsumexp(x, -1, keepdims=True)); x is [..., N]."""
    orig_shape = x.shape
    n = orig_shape[-1]
    b = 1
    for d in orig_shape[:-1]:
        b *= d
    x2 = x.reshape(b, n)

    io_bytes = jnp.dtype(x.dtype).itemsize
    vmem_limit = _vmem_limit_bytes()
    tile_b = _choose_tile_b(b, n, io_bytes, vmem_limit)

    # Last block dim == full array dim -> no class padding required.
    spec = pl.BlockSpec((tile_b, n), lambda i: (i, 0))
    logits2 = pl.pallas_call(
        _log_softmax_kernel,
        out_shape=jax.ShapeDtypeStruct((b, n), x.dtype),
        grid_spec=pl.GridSpec(
            grid=(pl.cdiv(b, tile_b),),       # ragged last block is fine
            in_specs=[spec],
            out_specs=spec,
        ),
        compiler_params=pltpu.CompilerParams(
            dimension_semantics=("parallel",),  # independent batch tiles
            vmem_limit_bytes=vmem_limit,
        ),
    )(x2)

    return logits2.reshape(orig_shape)


categorical_forward = jax.jit(categorical_forward)


class FixedCategoricalJAX:
    """Mirrors torch.distributions.Categorical(logits=...) exposed state."""

    def __init__(self, logits):
        self.logits = logits  # already normalized: x - logsumexp(x, -1)

    @property
    def probs(self):
        # Lazy, exactly like torch's lazy_property: softmax(x) == exp(normalized logits).
        return jnp.exp(self.logits)

    def log_prob(self, value):
        # Plain JAX glue (gather over the event axis).
        return jnp.take_along_axis(self.logits, value[..., None], axis=-1)[..., 0]

    def mode(self):
        return jnp.argmax(self.logits, axis=-1)

    # TODO(synk): sample() (RNG categorical draw) is left to plain JAX callers.


class Categorical:
    """JAX/Pallas equivalent of the PyTorch `Categorical` module (no params)."""

    def __call__(self, x):
        return FixedCategoricalJAX(categorical_forward(x))


if __name__ == "__main__":
    key = jax.random.PRNGKey(0)
    k1, k2, k3, k4 = jax.random.split(key, 4)

    # 1) Small policy-head shape: 8 "agents", 16 discrete actions (N < 128).
    x1 = jax.random.normal(k1, (8, 16), dtype=jnp.float32)
    dist1 = Categorical()(x1)
    jax.block_until_ready((dist1.logits, dist1.probs))
    assert jnp.allclose(dist1.logits, x1 - jax.nn.logsumexp(x1, axis=-1, keepdims=True),
                        atol=1e-5, rtol=1e-5)
    assert jnp.allclose(dist1.probs, jax.nn.softmax(x1, axis=-1), atol=1e-5, rtol=1e-5)

    # 2) Leading batch dims + non-128-aligned class count (full-dim last block).
    x2 = jax.random.normal(k2, (2, 12, 130), dtype=jnp.float32)
    dist2 = Categorical()(x2)
    jax.block_until_ready((dist2.logits, dist2.probs))
    assert jnp.allclose(dist2.logits, x2 - jax.nn.logsumexp(x2, axis=-1, keepdims=True),
                        atol=1e-5, rtol=1e-5)
    assert jnp.allclose(dist2.probs, jax.nn.softmax(x2, axis=-1), atol=1e-5, rtol=1e-5)

    # 3) Odd batch (35 rows) -> exercises the ragged batch block (no padding pass).
    x3 = jax.random.normal(k3, (5, 7, 33), dtype=jnp.float32)
    dist3 = Categorical()(x3)
    jax.block_until_ready((dist3.logits, dist3.probs))
    assert jnp.allclose(dist3.logits, x3 - jax.nn.logsumexp(x3, axis=-1, keepdims=True),
                        atol=1e-5, rtol=1e-5)
    assert jnp.allclose(dist3.probs, jax.nn.softmax(x3, axis=-1), atol=1e-5, rtol=1e-5)

    # 4) bf16 I/O path (compute stays f32 inside the kernel).
    x4 = jax.random.normal(k4, (4, 96), dtype=jnp.float32).astype(jnp.bfloat16)
    dist4 = Categorical()(x4)
    jax.block_until_ready(dist4.logits)
    x4f = x4.astype(jnp.float32)
    ref4 = x4f - jax.nn.logsumexp(x4f, axis=-1, keepdims=True)
    assert jnp.allclose(dist4.logits.astype(jnp.float32), ref4, atol=1e-1)

    print("KERNEL_OK")
</pallas_src>

<mosaic_0001>
module attributes {stable_mosaic.version = 11 : i64} {
  func.func @_log_softmax_kernel(%arg0: i32, %arg1: memref<8x16xf32, #tpu.memory_space<vmem>>, %arg2: memref<8x16xf32, #tpu.memory_space<vmem>>) attributes {dimension_semantics = [#tpu.dimension_semantics<parallel>], iteration_bounds = array<i64: 1>, scalar_prefetch = 0 : i64, scratch_operands = 0 : i64, tpu.core_type = #tpu.core_type<tc>, window_params = [{transform_indices = @transform_0, window_bounds = array<i64: 8, 16>}, {transform_indices = @transform_1, window_bounds = array<i64: 8, 16>}]} {
    %c0 = arith.constant 0 : index
    %c0_0 = arith.constant 0 : index
    %0 = vector.load %arg1[%c0, %c0_0] : memref<8x16xf32, #tpu.memory_space<vmem>>, vector<8x16xf32>
    %cst = arith.constant dense<0xFF800000> : vector<8xf32>
    %1 = vector.multi_reduction <maximumf>, %0, %cst [1] : vector<8x16xf32> to vector<8xf32>
    %2 = vector.shape_cast %1 : vector<8xf32> to vector<8x1xf32>
    %3 = vector.broadcast %2 : vector<8x1xf32> to vector<8x16xf32>
    %4 = arith.subf %0, %3 : vector<8x16xf32>
    %5 = math.exp %4 : vector<8x16xf32>
    %cst_1 = arith.constant dense<0.000000e+00> : vector<8xf32>
    %6 = vector.multi_reduction <add>, %5, %cst_1 [1] : vector<8x16xf32> to vector<8xf32>
    %7 = vector.shape_cast %6 : vector<8xf32> to vector<8x1xf32>
    %8 = math.log %7 : vector<8x1xf32>
    %9 = vector.broadcast %8 : vector<8x1xf32> to vector<8x16xf32>
    %10 = arith.subf %4, %9 : vector<8x16xf32>
    %c0_2 = arith.constant 0 : index
    %c0_3 = arith.constant 0 : index
    %11 = vector.load %arg2[%c0_2, %c0_3] : memref<8x16xf32, #tpu.memory_space<vmem>>, vector<8x16xf32>
    tpu.vector_store %arg2[%c0_2, %c0_3], %10 {strides = array<i32>} : memref<8x16xf32, #tpu.memory_space<vmem>>, vector<8x16xf32>,
    return
  }
  func.func @transform_0(%arg0: i32) -> (i32, i32) {
    %c0_i32 = arith.constant 0 : i32
    %c0_i32_0 = arith.constant 0 : i32
    return %arg0, %c0_i32 : i32, i32
  }
  func.func @transform_1(%arg0: i32) -> (i32, i32) {
    %c0_i32 = arith.constant 0 : i32
    %c0_i32_0 = arith.constant 0 : i32
    return %arg0, %c0_i32 : i32, i32
  }
}

</mosaic_0001>

<llo_original>
// kernel: categorical_forward.1
$region0: #{categorical_forward.1}
  #allocation0 [shape = 'u32[]', space=smem, size = 0x4, offset = 0x4, fixed_abs, tag = 'smem constant byte address 0x4 - core index']
  #allocation1 [shape = 'u32[72,128]{1,0:T(1,128)}', space=vmem, size = 0x9000, scoped, tag = 'internal scratch']
  %s0 = inlined_call_operand.hbm [shape: f32[8,16], index: 0, kind: input, shape index: {}]
  %s1 = inlined_call_operand.hbm [shape: f32[8,16], index: 1, kind: output, shape index: {}]
  %s2 = sld [smem:[#allocation0]]
  $region18: #{categorical_forward.1} parent=0
    _
  %s4 = ssub.s32 1, %s2
  %s5 = scalar_select 0, %s4, %s2
  $region1: #{categorical_forward.1} parent=0
    #allocation2 [shape = 'u8[4096]{0}', space=vmem, size = 0x1000, scoped, tag = 'input window, operand 0, single buffered']
    #allocation3 [shape = 's32[1]{0}', space=sflag, size = 0x4, scoped, tag = 'scoped memory for categorical_forward.1']
    #allocation4 [shape = 's32[1]{0}', space=sflag, size = 0x4, scoped, tag = 'scoped memory for categorical_forward.1']
    #allocation5 [shape = 'u8[4096]{0}', space=vmem, size = 0x1000, scoped, tag = 'output window, operand 0, single buffered']
    %6 = vsyncpa [#allocation3], 0
    %7 = vsyncpa [#allocation4], 0
    // Predicated region
    $region2: #{categorical_forward.1} parent=1 // pred_check
      _
    $region3: #{categorical_forward.1} parent=1 // pred_check_branch
      %9 = sbr.rel (0) target = $region5
    $region4: #{categorical_forward.1} parent=1 // pred_region
      %11 = vsyncadd [#allocation3], 0
      %s13 = sshll.u32 %s0, 4
      %s14 = int_to_ptr.hbm [resolvable:$true] %s13
      %s15 = sshll.u32 [#allocation2], 4
      %s16 = int_to_ptr.vmem [resolvable:$true] %s15
      %18 = dma.hbm_to_vmem [thread:$0]  %s14, 128, %s16, [#allocation3]
    $region5: #{categorical_forward.1} parent=1 // pred_fallthru
      _
    // Predicated region
    $region6: #{categorical_forward.1} parent=1 // pred_check
      _
    $region7: #{categorical_forward.1} parent=1 // pred_check_branch
      %20 = sbr.rel (0) target = $region9
    $region8: #{categorical_forward.1} parent=1 // pred_region
      %22 = dma.done [#allocation3], 128
    $region9: #{categorical_forward.1} parent=1 // pred_fallthru
      _
    %v23 = vld [vmem:[#allocation2] sm:$0xff]
    %vm24 = vcmask 130048
    %v25 = vsel %vm24, %v23, -inf
    %26 = vmax.xlane.f32.xlu0 %v25
    %v27 = vpop.xlane.xlu0 %26
    %v28 = vsub.f32 %v23, %v27
    %v29 = vmul.f32 %v28, 1.442695
    %v30 = vpow.pop %v29
    %v31 = vsel %vm24, %v30, 0.0
    %32 = vadd.xlane.f32.xlu0 %v31
    %v33 = vpop.xlane.xlu0 %32
    %v34 = vlog2.pop %v33
    %v35 = vmul.f32 %v34, 0.6931472
    %v36 = vsub.f32 %v28, %v35
    %37 = vst.msk [vmem:[#allocation5] sm:$0xff] %vm24, %v36
    // Predicated region
    $region10: #{categorical_forward.1} parent=1 // pred_check
      _
    $region11: #{categorical_forward.1} parent=1 // pred_check_branch
      %39 = sbr.rel (0) target = $region13
    $region12: #{categorical_forward.1} parent=1 // pred_region
      %41 = vsyncadd [#allocation4], 0
      %s43 = sshll.u32 [#allocation5], 4
      %s44 = int_to_ptr.vmem [resolvable:$true] %s43
      %s45 = sshll.u32 %s1, 4
      %s46 = int_to_ptr.hbm [resolvable:$true] %s45
      %48 = dma.vmem_to_hbm [thread:$0]  %s44, 128, %s46, [#allocation4]
    $region13: #{categorical_forward.1} parent=1 // pred_fallthru
      _
    // Predicated region
    $region14: #{categorical_forward.1} parent=1 // pred_check
      _
    $region15: #{categorical_forward.1} parent=1 // pred_check_branch
      %50 = sbr.rel (0) target = $region17
    $region16: #{categorical_forward.1} parent=1 // pred_region
      %52 = dma.done [#allocation4], 128
    $region17: #{categorical_forward.1} parent=1 // pred_fallthru
      _
    %53 = vsyncpa [#allocation3], 1
    %54 = vsyncpa [#allocation4], 1

</llo_original>
